<compile_context>
chip_gen: v5e
topology: v5e:2x2
jax: 0.10.0
libtpu: 0.0.40
codegen_flags: <defaults>
</compile_context>

<pallas_src>
import jax
import jax.numpy as jnp
from jax.experimental import pallas as pl
from jax.experimental.pallas import tpu as pltpu


def _copy_kernel(x_ref, o_ref):
    # One (row_tile, cols) block per grid step: HBM -> VMEM -> HBM copy.
    o_ref[...] = x_ref[...]


_LANE_CANDIDATES = (2048, 1024, 512, 256, 128)   # lane-dense last-dim choices
_BLOCK_BYTES_BUDGET = 8 * 1024 * 1024            # ~8 MiB/block
_VMEM_LIMIT_BYTES = 48 * 1024 * 1024             # 4 x 8 MiB double-buffered + slack


def _pick_lane_dim(n_elems):
    """Largest multiple-of-128 last dim dividing n_elems, preferring >=8 rows."""
    divisible = [ld for ld in _LANE_CANDIDATES if n_elems % ld == 0]
    if not divisible:
        return None
    for ld in divisible:
        if n_elems // ld >= 8:
            return ld
    return divisible[-1]


def _pick_row_tile(rows, lane_bytes_per_row):
    """Sublane-aligned row tile within the VMEM budget, guaranteeing >=2 grid
    steps whenever the row count allows it (v7x megacore sharding)."""
    sublane = 8
    if rows <= sublane:
        return rows                               # block == full extent (legal)
    budget_rows = max(1, _BLOCK_BYTES_BUDGET // lane_bytes_per_row)
    row_tile = max(sublane, (budget_rows // sublane) * sublane)
    if row_tile >= rows:
        # A 1-step grid would leave one v7x TensorCore idle: split roughly in
        # half (sublane-aligned); the trailing block may be partial (masked).
        half = -(-rows // 2)
        row_tile = max(sublane, (-(-half // sublane)) * sublane)
    return min(row_tile, rows)


def _tiled_copy_2d(x2d):
    """Row-tiled copy of a 2D slab; last block dim equals the full last dim."""
    rows, cols = x2d.shape
    itemsize = jnp.dtype(x2d.dtype).itemsize
    cols_padded = (-(-cols // 128)) * 128         # lane-padded VMEM footprint
    row_tile = _pick_row_tile(rows, cols_padded * itemsize)
    nbytes = rows * cols * itemsize
    return pl.pallas_call(
        _copy_kernel,
        out_shape=jax.ShapeDtypeStruct((rows, cols), x2d.dtype),
        grid_spec=pltpu.PrefetchScalarGridSpec(
            num_scalar_prefetch=0,
            grid=(pl.cdiv(rows, row_tile),),
            in_specs=[pl.BlockSpec((row_tile, cols), lambda i: (i, 0))],
            out_specs=pl.BlockSpec((row_tile, cols), lambda i: (i, 0)),
        ),
        compiler_params=pltpu.CompilerParams(
            dimension_semantics=("parallel",),
            vmem_limit_bytes=_VMEM_LIMIT_BYTES,
        ),
        cost_estimate=pl.CostEstimate(
            flops=0, transcendentals=0, bytes_accessed=2 * nbytes),
    )(x2d)


def aggregator(features, target_dim, materialize=False):
    """JAX/Pallas equivalent of Aggregator(target_dim).forward(features).

    materialize=False (default): metadata-only reshape (what the PyTorch module
    does — zero HBM traffic).  materialize=True: force a fresh HBM buffer via
    the lane-dense tiled Pallas copy.
    """
    b = features.shape[0]
    flat = features.reshape(b, -1)                # metadata-only (row-major)
    total = flat.shape[1]
    assert total % target_dim == 0, \
        "per-sample feature count must be divisible by target_dim"
    m = total // target_dim

    if not materialize:
        return flat.reshape(b, m, target_dim)     # fast path: no kernel at all

    # TODO(synk): a direct HBM->HBM DMA (memory_space=pl.ANY + make_async_copy)
    # would skip the VMEM round trip entirely; kept VMEM-staged for simplicity.
    n_elems = b * total
    lane_dim = _pick_lane_dim(n_elems)
    if lane_dim is not None:
        # Lane-dense tiled path (preferred): copy a (rows, lane_dim) view,
        # then reshape to (b, m, target_dim) for free afterwards.
        out2d = _tiled_copy_2d(flat.reshape(n_elems // lane_dim, lane_dim))
        return out2d.reshape(b, m, target_dim)

    # Lane-sparse fallback (element count not a multiple of 128): row-tiled
    # (b*m, target_dim) copy — still VMEM-bounded, partial lanes masked.
    out2d = _tiled_copy_2d(flat.reshape(b * m, target_dim))
    return out2d.reshape(b, m, target_dim)


if __name__ == "__main__":
    key = jax.random.PRNGKey(0)
    k0, k1, k2 = jax.random.split(key, 3)

    # 1) Default path (metadata-only reshape, as in the PyTorch module).
    B, C, H, W = 2, 4, 16, 16
    target_dim = 32                               # C*H*W = 1024 -> (B, 32, 32)
    features = jax.random.normal(k0, (B, C, H, W), dtype=jnp.float32)
    ref = features.reshape(B, -1, target_dim)
    out = jax.block_until_ready(aggregator(features, target_dim))
    assert out.shape == (B, (C * H * W) // target_dim, target_dim)
    assert out.dtype == features.dtype
    assert jnp.array_equal(out, ref)

    # 2) Forced materialization: lane-dense Pallas copy kernel (small shape).
    out_k = jax.block_until_ready(aggregator(features, target_dim, materialize=True))
    assert out_k.shape == ref.shape and jnp.array_equal(out_k, ref)

    # 3) Forced materialization with a multi-step grid + partial last block.
    B2, C2, H2, W2 = 2, 8, 32, 48                 # n_elems=24576 -> 12 x 2048 rows
    feats2 = jax.random.normal(k1, (B2, C2, H2, W2), dtype=jnp.float32)
    ref2 = feats2.reshape(B2, -1, target_dim)
    out2 = jax.block_until_ready(aggregator(feats2, target_dim, materialize=True))
    assert out2.shape == ref2.shape and jnp.array_equal(out2, ref2)

    # 4) Lane-sparse fallback (element count not a multiple of 128).
    B3, C3, H3, W3, td3 = 2, 3, 4, 4, 24          # n_elems = 96
    feats3 = jax.random.normal(k2, (B3, C3, H3, W3), dtype=jnp.float32)
    ref3 = feats3.reshape(B3, -1, td3)
    out3 = jax.block_until_ready(aggregator(feats3, td3, materialize=True))
    assert out3.shape == ref3.shape and jnp.array_equal(out3, ref3)

    print("KERNEL_OK")
</pallas_src>

<mosaic_0001>
module attributes {stable_mosaic.version = 11 : i64} {
  func.func @_copy_kernel(%arg0: i32, %arg1: memref<8x256xf32, #tpu.memory_space<vmem>>, %arg2: memref<8x256xf32, #tpu.memory_space<vmem>>) attributes {dimension_semantics = [#tpu.dimension_semantics<parallel>], iteration_bounds = array<i64: 1>, scalar_prefetch = 0 : i64, scratch_operands = 0 : i64, tpu.core_type = #tpu.core_type<tc>, window_params = [{transform_indices = @transform_0, window_bounds = array<i64: 8, 256>}, {transform_indices = @transform_1, window_bounds = array<i64: 8, 256>}]} {
    %c0 = arith.constant 0 : index
    %c0_0 = arith.constant 0 : index
    %0 = vector.load %arg1[%c0, %c0_0] : memref<8x256xf32, #tpu.memory_space<vmem>>, vector<8x256xf32>
    %c0_1 = arith.constant 0 : index
    %c0_2 = arith.constant 0 : index
    %1 = vector.load %arg2[%c0_1, %c0_2] : memref<8x256xf32, #tpu.memory_space<vmem>>, vector<8x256xf32>
    tpu.vector_store %arg2[%c0_1, %c0_2], %0 {strides = array<i32>} : memref<8x256xf32, #tpu.memory_space<vmem>>, vector<8x256xf32>,
    return
  }
  func.func @transform_0(%arg0: i32) -> (i32, i32) {
    %c0_i32 = arith.constant 0 : i32
    %c0_i32_0 = arith.constant 0 : i32
    return %arg0, %c0_i32 : i32, i32
  }
  func.func @transform_1(%arg0: i32) -> (i32, i32) {
    %c0_i32 = arith.constant 0 : i32
    %c0_i32_0 = arith.constant 0 : i32
    return %arg0, %c0_i32 : i32, i32
  }
}

</mosaic_0001>

<llo_original>
// kernel: tpu_custom_call.1
$region0: #{tpu_custom_call.1}
  #allocation0 [shape = 'u32[]', space=smem, size = 0x4, offset = 0x4, fixed_abs, tag = 'smem constant byte address 0x4 - core index']
  #allocation1 [shape = 'u32[72,128]{1,0:T(1,128)}', space=vmem, size = 0x9000, scoped, tag = 'internal scratch']
  %s0 = inlined_call_operand.hbm [shape: f32[8,256], index: 0, kind: input, shape index: {}]
  %s1 = inlined_call_operand.hbm [shape: f32[8,256], index: 1, kind: output, shape index: {}]
  %s2 = sld [smem:[#allocation0]]
  $region18: #{tpu_custom_call.1} parent=0
    _
  %s4 = ssub.s32 1, %s2
  %s5 = scalar_select 0, %s4, %s2
  $region1: #{tpu_custom_call.1} parent=0
    #allocation2 [shape = 'u8[8192]{0}', space=vmem, size = 0x2000, scoped, tag = 'input window, operand 0, single buffered']
    #allocation3 [shape = 's32[1]{0}', space=sflag, size = 0x4, scoped, tag = 'scoped memory for tpu_custom_call.1']
    #allocation4 [shape = 's32[1]{0}', space=sflag, size = 0x4, scoped, tag = 'scoped memory for tpu_custom_call.1']
    #allocation5 [shape = 'u8[8192]{0}', space=vmem, size = 0x2000, scoped, tag = 'output window, operand 0, single buffered']
    %6 = vsyncpa [#allocation3], 0
    %7 = vsyncpa [#allocation4], 0
    // Predicated region
    $region2: #{tpu_custom_call.1} parent=1 // pred_check
      _
    $region3: #{tpu_custom_call.1} parent=1 // pred_check_branch
      %9 = sbr.rel (0) target = $region5
    $region4: #{tpu_custom_call.1} parent=1 // pred_region
      %11 = vsyncadd [#allocation3], 0
      %s13 = sshll.u32 %s0, 4
      %s14 = int_to_ptr.hbm [resolvable:$true] %s13
      %s15 = sshll.u32 [#allocation2], 4
      %s16 = int_to_ptr.vmem [resolvable:$true] %s15
      %18 = dma.hbm_to_vmem [thread:$0]  %s14, 256, %s16, [#allocation3]
    $region5: #{tpu_custom_call.1} parent=1 // pred_fallthru
      _
    // Predicated region
    $region6: #{tpu_custom_call.1} parent=1 // pred_check
      _
    $region7: #{tpu_custom_call.1} parent=1 // pred_check_branch
      %20 = sbr.rel (0) target = $region9
    $region8: #{tpu_custom_call.1} parent=1 // pred_region
      %22 = dma.done [#allocation3], 256
    $region9: #{tpu_custom_call.1} parent=1 // pred_fallthru
      _
    %v23 = vld [vmem:[#allocation2] sm:$0xff]
    %v24 = vld [vmem:[#allocation2 + $0x8] sm:$0xff]
    %25 = vst [vmem:[#allocation5] sm:$0xff] %v23
    %26 = vst [vmem:[#allocation5 + $0x8] sm:$0xff] %v24
    // Predicated region
    $region10: #{tpu_custom_call.1} parent=1 // pred_check
      _
    $region11: #{tpu_custom_call.1} parent=1 // pred_check_branch
      %28 = sbr.rel (0) target = $region13
    $region12: #{tpu_custom_call.1} parent=1 // pred_region
      %30 = vsyncadd [#allocation4], 0
      %s32 = sshll.u32 [#allocation5], 4
      %s33 = int_to_ptr.vmem [resolvable:$true] %s32
      %s34 = sshll.u32 %s1, 4
      %s35 = int_to_ptr.hbm [resolvable:$true] %s34
      %37 = dma.vmem_to_hbm [thread:$0]  %s33, 256, %s35, [#allocation4]
    $region13: #{tpu_custom_call.1} parent=1 // pred_fallthru
      _
    // Predicated region
    $region14: #{tpu_custom_call.1} parent=1 // pred_check
      _
    $region15: #{tpu_custom_call.1} parent=1 // pred_check_branch
      %39 = sbr.rel (0) target = $region17
    $region16: #{tpu_custom_call.1} parent=1 // pred_region
      %41 = dma.done [#allocation4], 256
    $region17: #{tpu_custom_call.1} parent=1 // pred_fallthru
      _
    %42 = vsyncpa [#allocation3], 1
    %43 = vsyncpa [#allocation4], 1

</llo_original>
